<compile_context>
chip_gen: v7x
topology: tpu7x:2x2x1
jax: 0.10.0
libtpu: 0.0.40
codegen_flags: <defaults>
</compile_context>

<pallas_src>
import functools

import jax
import jax.numpy as jnp
from jax import lax
from jax.experimental import pallas as pl
from jax.experimental.pallas import tpu as pltpu

_EPS_DIR = 1e-6   # F.normalize eps used inside pytorch3d lighting
_EPS_L1 = 1e-12   # F.normalize default eps for the dist-weight normalization


def _int_pow(x, n: int):
    """x ** n by repeated squaring (n >= 1, static python int)."""
    result = None
    base = x
    while n > 0:
        if n & 1:
            result = base if result is None else result * base
        base = base * base
        n >>= 1
    return result


def _approx_recip(x):
    """EUP approximate reciprocal + one Newton step (keeps f32 accuracy)."""
    if hasattr(pl, "reciprocal"):
        r = pl.reciprocal(x, approx=True)
        return r * (2.0 - x * r)
    return 1.0 / x


# --------------------------------------------------------------------------
# Stage 1: per-point Phong weights.  O(P) work, independent of K and M.
# --------------------------------------------------------------------------
def _point_lighting_kernel(pts_ref, nrm_ref, out_ref, *, params):
    # pts_ref / nrm_ref: (3, TP); out_ref: (2, TP) = [diffuse_w ; spec_w]
    p = pts_ref[...]
    n = nrm_ref[...]
    px, py, pz = p[0:1], p[1:2], p[2:3]          # (1, TP) each
    nx, ny, nz = n[0:1], n[1:2], n[2:3]

    lx, ly, lz = params["light_location"]
    cx, cy, cz = params["camera_position"]
    shininess = params["shininess"]

    dx, dy, dz = lx - px, ly - py, lz - pz        # point -> light
    vx, vy, vz = cx - px, cy - py, cz - pz        # point -> camera

    # rsqrt on clamped squared norms (EUP) == 1 / max(||.||, eps); no unit
    # vectors are materialized, only raw dot products are combined.
    eps2 = _EPS_DIR * _EPS_DIR
    inv_n = lax.rsqrt(jnp.maximum(nx * nx + ny * ny + nz * nz, eps2))
    inv_d = lax.rsqrt(jnp.maximum(dx * dx + dy * dy + dz * dz, eps2))
    inv_v = lax.rsqrt(jnp.maximum(vx * vx + vy * vy + vz * vz, eps2))

    nd = nx * dx + ny * dy + nz * dz
    vn = vx * nx + vy * ny + vz * nz
    vd = vx * dx + vy * dy + vz * dz

    cos_angle = nd * (inv_n * inv_d)
    diffuse_w = jnp.maximum(cos_angle, 0.0)

    # v . reflect(d_hat about n_hat) = 2*cos*(v.n)/(|v||n|) - (v.d)/(|v||d|)
    vr = 2.0 * cos_angle * vn * (inv_v * inv_n) - vd * (inv_v * inv_d)
    alpha = jnp.where(cos_angle > 0.0, jnp.maximum(vr, 0.0), 0.0)
    if float(shininess).is_integer() and float(shininess) >= 1.0:
        spec_w = _int_pow(alpha, int(shininess))
    else:
        spec_w = jnp.power(alpha, float(shininess))

    out_ref[...] = jnp.concatenate([diffuse_w, spec_w], axis=0)   # (2, TP)


# --------------------------------------------------------------------------
# Stage 2: per-pixel compositing (the bulk of the data: K fragments x M pixels)
# --------------------------------------------------------------------------
def _composite_kernel(dw_ref, sw_ref, dists_ref, out_ref, *, params):
    # dw_ref / sw_ref / dists_ref: (K_pad, TM); out_ref: (3, TM)
    d = dists_ref[...]
    dw = dw_ref[...]
    sw = sw_ref[...]

    # F.normalize(p=1) over K: zero out missing fragments (dists == -1).
    w = jnp.where(d != -1.0, d, 0.0)                                   # (K, TM)
    denom = jnp.maximum(jnp.sum(jnp.abs(w), axis=0, keepdims=True), _EPS_L1)
    inv_denom = _approx_recip(denom)                                   # (1, TM)

    # Reduce over K first, normalize the three (1, TM) sums afterwards
    # (3 multiplies per pixel instead of K).
    s0 = jnp.sum(w, axis=0, keepdims=True) * inv_denom
    s1 = jnp.sum(w * dw, axis=0, keepdims=True) * inv_denom
    s2 = jnp.sum(w * sw, axis=0, keepdims=True) * inv_denom

    la, ld, ls = params["light_ambient"], params["light_diffuse"], params["light_specular"]
    ma, md, ms = params["mat_ambient"], params["mat_diffuse"], params["mat_specular"]
    # Per-channel rows from Python-float coefficients: no captured jnp constants.
    rows = [(ma[c] * la[c]) * s0 + (md[c] * ld[c]) * s1 + (ms[c] * ls[c]) * s2
            for c in range(3)]
    out_ref[...] = jnp.concatenate(rows, axis=0)                       # (3, TM)


def shading_compositor_forward(idx, dists, points_packed, normals_packed, params,
                               tile_m: int = 8192):
    """Equivalent of ShadingCompositor.forward (the background branch is never
    taken for 3-channel images, matching the reference module)."""
    N, H, W, K = idx.shape
    M = N * H * W
    P = points_packed.shape[0]

    # ---- Stage 1: per-point lighting weights (Pallas, O(P)) ----
    pts_t = jnp.asarray(points_packed, jnp.float32).T                  # (3, P)
    nrm_t = jnp.asarray(normals_packed, jnp.float32).T                 # (3, P)
    tp = min(4096, pl.cdiv(P, 128) * 128)
    P_pad = pl.cdiv(P, tp) * tp
    if P_pad != P:
        pts_t = jnp.pad(pts_t, ((0, 0), (0, P_pad - P)))
        nrm_t = jnp.pad(nrm_t, ((0, 0), (0, P_pad - P)))

    light_kernel = functools.partial(_point_lighting_kernel, params=params)
    point_ws = pl.pallas_call(
        light_kernel,
        out_shape=jax.ShapeDtypeStruct((2, P_pad), jnp.float32),
        grid_spec=pltpu.PrefetchScalarGridSpec(
            num_scalar_prefetch=0,
            grid=(P_pad // tp,),
            in_specs=[pl.BlockSpec((3, tp), lambda i: (0, i)),
                      pl.BlockSpec((3, tp), lambda i: (0, i))],
            out_specs=pl.BlockSpec((2, tp), lambda i: (0, i)),
        ),
        compiler_params=pltpu.CompilerParams(dimension_semantics=("parallel",)),
    )(pts_t, nrm_t)
    diffuse_w, spec_w = point_ws[0], point_ws[1]                       # (P_pad,) each

    # ---- glue (plain JAX): per-fragment gather of the two scalar tables ----
    safe_idx = jnp.where(idx < 0, 0, idx).reshape(M, K).astype(jnp.int32)
    dflat = jnp.asarray(dists, jnp.float32).reshape(M, K)

    # Pad K to a multiple of 8 so sublanes stay dense; padded layers get
    # dists = -1.0 -> zero weight -> no contribution.
    K_pad = pl.cdiv(K, 8) * 8
    if K_pad != K:
        safe_idx = jnp.pad(safe_idx, ((0, 0), (0, K_pad - K)))
        dflat = jnp.pad(dflat, ((0, 0), (0, K_pad - K)), constant_values=-1.0)

    # Pixel-major layout: K on sublanes, flattened pixels on lanes.  Only the
    # cheap int32 idx / f32 dists are transposed; the gathers below then emit
    # (K_pad, M) directly in kernel layout.
    idx_t = safe_idx.T                                                  # (K_pad, M)
    dflat = dflat.T                                                     # (K_pad, M)

    # Lane tiling: sized from K_pad against a VMEM budget (2 buffers x 3 f32
    # streams) so it also fits v7x's smaller VMEM; keep >= 2 grid steps so the
    # "parallel" pixel axis can split across v7x's two TensorCores.
    vmem_budget = 20 * 1024 * 1024
    tm_vmem = max(128, (vmem_budget // (2 * 3 * 4 * K_pad) // 128) * 128)
    tile_m = max(128, (int(tile_m) // 128) * 128)
    m_aligned = pl.cdiv(M, 128) * 128
    tm = max(128, min(tile_m, tm_vmem, m_aligned))
    if m_aligned // tm < 2 and m_aligned >= 256:
        tm = max(128, ((m_aligned // 2) // 128) * 128)
    m_pad = pl.cdiv(M, tm) * tm
    if m_pad != M:
        pad = m_pad - M
        idx_t = jnp.pad(idx_t, ((0, 0), (0, pad)))
        dflat = jnp.pad(dflat, ((0, 0), (0, pad)), constant_values=-1.0)

    dw_g = jnp.take(diffuse_w, idx_t, axis=0)                           # (K_pad, m_pad)
    sw_g = jnp.take(spec_w, idx_t, axis=0)                              # (K_pad, m_pad)

    # ---- Stage 2: weighted compositing (Pallas, O(K*M)) ----
    comp_kernel = functools.partial(_composite_kernel, params=params)
    out = pl.pallas_call(
        comp_kernel,
        out_shape=jax.ShapeDtypeStruct((3, m_pad), jnp.float32),
        grid_spec=pltpu.PrefetchScalarGridSpec(
            num_scalar_prefetch=0,
            grid=(m_pad // tm,),
            in_specs=[pl.BlockSpec((K_pad, tm), lambda i: (0, i)),
                      pl.BlockSpec((K_pad, tm), lambda i: (0, i)),
                      pl.BlockSpec((K_pad, tm), lambda i: (0, i))],
            out_specs=pl.BlockSpec((3, tm), lambda i: (0, i)),
        ),
        compiler_params=pltpu.CompilerParams(
            dimension_semantics=("parallel",),
            vmem_limit_bytes=32 * 1024 * 1024,
        ),
    )(dw_g, sw_g, dflat)

    images = out[:, :M].T.reshape(N, H, W, 3)
    # TODO(synk): _add_background_color_to_images not implemented -- the
    # reference only triggers it for 4-channel images, which _shade never emits.
    return images


def _reference(idx, dists, points_packed, normals_packed, params):
    """Pure-JAX mirror of the PyTorch _shade semantics (per-fragment form)."""
    safe_idx = jnp.where(idx < 0, 0, idx)
    pts = points_packed[safe_idx]                                       # (N,H,W,K,3)
    nrm = normals_packed[safe_idx]

    def l2n(x, eps=_EPS_DIR):
        n = jnp.sqrt(jnp.sum(x * x, axis=-1, keepdims=True))
        return x / jnp.maximum(n, eps)

    loc = jnp.asarray(params["light_location"], jnp.float32)
    cam = jnp.asarray(params["camera_position"], jnp.float32)
    nh = l2n(nrm)
    dh = l2n(loc - pts)
    vh = l2n(cam - pts)
    cos = jnp.sum(nh * dh, axis=-1)
    diffuse = jnp.maximum(cos, 0.0)
    refl = -dh + 2.0 * cos[..., None] * nh
    alpha = jnp.maximum(jnp.sum(vh * refl, axis=-1), 0.0) * (cos > 0.0).astype(jnp.float32)
    spec = _int_pow(alpha, int(params["shininess"]))
    la = jnp.asarray(params["light_ambient"]); ld = jnp.asarray(params["light_diffuse"])
    ls = jnp.asarray(params["light_specular"])
    ma = jnp.asarray(params["mat_ambient"]); md = jnp.asarray(params["mat_diffuse"])
    ms = jnp.asarray(params["mat_specular"])
    colors = (ma * la) + (md * ld) * diffuse[..., None] + (ms * ls) * spec[..., None]
    dist_mask = jnp.where(dists != -1.0, dists, 0.0)
    denom = jnp.maximum(jnp.sum(jnp.abs(dist_mask), axis=-1, keepdims=True), _EPS_L1)
    w = dist_mask / denom
    return jnp.sum(w[..., None] * colors, axis=-2)


if __name__ == "__main__":
    key = jax.random.PRNGKey(0)
    N, H, W, K, P = 2, 16, 16, 8, 64
    k1, k2, k3, k4 = jax.random.split(key, 4)

    points_packed = jax.random.normal(k1, (P, 3), jnp.float32)
    normals_packed = jax.random.normal(k2, (P, 3), jnp.float32)
    idx = jax.random.randint(k3, (N, H, W, K), -1, P)                   # -1 marks empty
    dists = jnp.where(
        idx < 0,
        jnp.float32(-1.0),
        jax.random.uniform(k4, (N, H, W, K), jnp.float32, 0.01, 1.0),
    )

    # Deterministic parameters (pytorch3d PointLights / Materials defaults,
    # plus a fixed synthetic camera center).
    params = dict(
        light_location=(0.0, 1.0, 0.0),
        light_ambient=(0.5, 0.5, 0.5),
        light_diffuse=(0.3, 0.3, 0.3),
        light_specular=(0.2, 0.2, 0.2),
        camera_position=(0.0, 0.0, 5.0),
        mat_ambient=(1.0, 1.0, 1.0),
        mat_diffuse=(1.0, 1.0, 1.0),
        mat_specular=(1.0, 1.0, 1.0),
        shininess=64.0,
    )

    images = shading_compositor_forward(idx, dists, points_packed, normals_packed, params)
    images = jax.block_until_ready(images)

    ref = _reference(idx, dists, points_packed, normals_packed, params)
    assert images.shape == (N, H, W, 3), images.shape
    assert jnp.allclose(images, ref, atol=1e-4, rtol=1e-4), float(jnp.max(jnp.abs(images - ref)))
    print("KERNEL_OK")
</pallas_src>

<mosaic_0001>
module attributes {stable_mosaic.version = 11 : i64} {
  func.func @_point_lighting_kernel(%arg0: i32, %arg1: memref<3x128xf32, #tpu.memory_space<vmem>>, %arg2: memref<3x128xf32, #tpu.memory_space<vmem>>, %arg3: memref<2x128xf32, #tpu.memory_space<vmem>>) attributes {dimension_semantics = [#tpu.dimension_semantics<parallel>], iteration_bounds = array<i64: 1>, scalar_prefetch = 0 : i64, scratch_operands = 0 : i64, tpu.core_type = #tpu.core_type<tc>, window_params = [{transform_indices = @transform_0, window_bounds = array<i64: 3, 128>}, {transform_indices = @transform_1, window_bounds = array<i64: 3, 128>}, {transform_indices = @transform_2, window_bounds = array<i64: 2, 128>}]} {
    %c0 = arith.constant 0 : index
    %c0_0 = arith.constant 0 : index
    %0 = vector.load %arg1[%c0, %c0_0] : memref<3x128xf32, #tpu.memory_space<vmem>>, vector<3x128xf32>
    %c0_1 = arith.constant 0 : index
    %c0_2 = arith.constant 0 : index
    %1 = vector.load %arg2[%c0_1, %c0_2] : memref<3x128xf32, #tpu.memory_space<vmem>>, vector<3x128xf32>
    %2 = vector.extract_strided_slice %0 {offsets = [0, 0], sizes = [1, 128], strides = [1, 1]} : vector<3x128xf32> to vector<1x128xf32>
    %3 = vector.extract_strided_slice %0 {offsets = [1, 0], sizes = [1, 128], strides = [1, 1]} : vector<3x128xf32> to vector<1x128xf32>
    %4 = vector.extract_strided_slice %0 {offsets = [2, 0], sizes = [1, 128], strides = [1, 1]} : vector<3x128xf32> to vector<1x128xf32>
    %5 = vector.extract_strided_slice %1 {offsets = [0, 0], sizes = [1, 128], strides = [1, 1]} : vector<3x128xf32> to vector<1x128xf32>
    %6 = vector.extract_strided_slice %1 {offsets = [1, 0], sizes = [1, 128], strides = [1, 1]} : vector<3x128xf32> to vector<1x128xf32>
    %7 = vector.extract_strided_slice %1 {offsets = [2, 0], sizes = [1, 128], strides = [1, 1]} : vector<3x128xf32> to vector<1x128xf32>
    %cst = arith.constant 0.000000e+00 : f32
    %8 = vector.broadcast %cst : f32 to vector<1x128xf32>
    %9 = arith.subf %8, %2 : vector<1x128xf32>
    %cst_3 = arith.constant 1.000000e+00 : f32
    %10 = vector.broadcast %cst_3 : f32 to vector<1x128xf32>
    %11 = arith.subf %10, %3 : vector<1x128xf32>
    %cst_4 = arith.constant 0.000000e+00 : f32
    %12 = vector.broadcast %cst_4 : f32 to vector<1x128xf32>
    %13 = arith.subf %12, %4 : vector<1x128xf32>
    %cst_5 = arith.constant 0.000000e+00 : f32
    %14 = vector.broadcast %cst_5 : f32 to vector<1x128xf32>
    %15 = arith.subf %14, %2 : vector<1x128xf32>
    %cst_6 = arith.constant 0.000000e+00 : f32
    %16 = vector.broadcast %cst_6 : f32 to vector<1x128xf32>
    %17 = arith.subf %16, %3 : vector<1x128xf32>
    %cst_7 = arith.constant 5.000000e+00 : f32
    %18 = vector.broadcast %cst_7 : f32 to vector<1x128xf32>
    %19 = arith.subf %18, %4 : vector<1x128xf32>
    %20 = arith.mulf %5, %5 : vector<1x128xf32>
    %21 = arith.mulf %6, %6 : vector<1x128xf32>
    %22 = arith.addf %20, %21 : vector<1x128xf32>
    %23 = arith.mulf %7, %7 : vector<1x128xf32>
    %24 = arith.addf %22, %23 : vector<1x128xf32>
    %cst_8 = arith.constant 9.99999996E-13 : f32
    %25 = vector.broadcast %cst_8 : f32 to vector<1x128xf32>
    %26 = arith.maximumf %24, %25 : vector<1x128xf32>
    %27 = math.rsqrt %26 : vector<1x128xf32>
    %28 = arith.mulf %9, %9 : vector<1x128xf32>
    %29 = arith.mulf %11, %11 : vector<1x128xf32>
    %30 = arith.addf %28, %29 : vector<1x128xf32>
    %31 = arith.mulf %13, %13 : vector<1x128xf32>
    %32 = arith.addf %30, %31 : vector<1x128xf32>
    %cst_9 = arith.constant 9.99999996E-13 : f32
    %33 = vector.broadcast %cst_9 : f32 to vector<1x128xf32>
    %34 = arith.maximumf %32, %33 : vector<1x128xf32>
    %35 = math.rsqrt %34 : vector<1x128xf32>
    %36 = arith.mulf %15, %15 : vector<1x128xf32>
    %37 = arith.mulf %17, %17 : vector<1x128xf32>
    %38 = arith.addf %36, %37 : vector<1x128xf32>
    %39 = arith.mulf %19, %19 : vector<1x128xf32>
    %40 = arith.addf %38, %39 : vector<1x128xf32>
    %cst_10 = arith.constant 9.99999996E-13 : f32
    %41 = vector.broadcast %cst_10 : f32 to vector<1x128xf32>
    %42 = arith.maximumf %40, %41 : vector<1x128xf32>
    %43 = math.rsqrt %42 : vector<1x128xf32>
    %44 = arith.mulf %5, %9 : vector<1x128xf32>
    %45 = arith.mulf %6, %11 : vector<1x128xf32>
    %46 = arith.addf %44, %45 : vector<1x128xf32>
    %47 = arith.mulf %7, %13 : vector<1x128xf32>
    %48 = arith.addf %46, %47 : vector<1x128xf32>
    %49 = arith.mulf %15, %5 : vector<1x128xf32>
    %50 = arith.mulf %17, %6 : vector<1x128xf32>
    %51 = arith.addf %49, %50 : vector<1x128xf32>
    %52 = arith.mulf %19, %7 : vector<1x128xf32>
    %53 = arith.addf %51, %52 : vector<1x128xf32>
    %54 = arith.mulf %15, %9 : vector<1x128xf32>
    %55 = arith.mulf %17, %11 : vector<1x128xf32>
    %56 = arith.addf %54, %55 : vector<1x128xf32>
    %57 = arith.mulf %19, %13 : vector<1x128xf32>
    %58 = arith.addf %56, %57 : vector<1x128xf32>
    %59 = arith.mulf %27, %35 : vector<1x128xf32>
    %60 = arith.mulf %48, %59 : vector<1x128xf32>
    %cst_11 = arith.constant 0.000000e+00 : f32
    %61 = vector.broadcast %cst_11 : f32 to vector<1x128xf32>
    %62 = arith.maximumf %60, %61 : vector<1x128xf32>
    %cst_12 = arith.constant 2.000000e+00 : f32
    %63 = vector.broadcast %cst_12 : f32 to vector<1x128xf32>
    %64 = arith.mulf %63, %60 : vector<1x128xf32>
    %65 = arith.mulf %64, %53 : vector<1x128xf32>
    %66 = arith.mulf %43, %27 : vector<1x128xf32>
    %67 = arith.mulf %65, %66 : vector<1x128xf32>
    %68 = arith.mulf %43, %35 : vector<1x128xf32>
    %69 = arith.mulf %58, %68 : vector<1x128xf32>
    %70 = arith.subf %67, %69 : vector<1x128xf32>
    %cst_13 = arith.constant 0.000000e+00 : f32
    %71 = vector.broadcast %cst_13 : f32 to vector<1x128xf32>
    %72 = arith.cmpf ogt, %60, %71 : vector<1x128xf32>
    %cst_14 = arith.constant 0.000000e+00 : f32
    %73 = vector.broadcast %cst_14 : f32 to vector<1x128xf32>
    %74 = arith.maximumf %70, %73 : vector<1x128xf32>
    %cst_15 = arith.constant 0.000000e+00 : f32
    %75 = vector.broadcast %cst_15 : f32 to vector<1x128xf32>
    %76 = arith.select %72, %74, %75 : vector<1x128xi1>, vector<1x128xf32>
    %77 = arith.mulf %76, %76 : vector<1x128xf32>
    %78 = arith.mulf %77, %77 : vector<1x128xf32>
    %79 = arith.mulf %78, %78 : vector<1x128xf32>
    %80 = arith.mulf %79, %79 : vector<1x128xf32>
    %81 = arith.mulf %80, %80 : vector<1x128xf32>
    %82 = arith.mulf %81, %81 : vector<1x128xf32>
    %83 = tpu.concatenate %62, %82 in 0 : vector<1x128xf32>, vector<1x128xf32> -> vector<2x128xf32>
    %c0_16 = arith.constant 0 : index
    %c0_17 = arith.constant 0 : index
    %84 = vector.load %arg3[%c0_16, %c0_17] : memref<2x128xf32, #tpu.memory_space<vmem>>, vector<2x128xf32>
    tpu.vector_store %arg3[%c0_16, %c0_17], %83 {strides = array<i32>} : memref<2x128xf32, #tpu.memory_space<vmem>>, vector<2x128xf32>,
    return
  }
  func.func @transform_0(%arg0: i32) -> (i32, i32) {
    %c0_i32 = arith.constant 0 : i32
    %c0_i32_0 = arith.constant 0 : i32
    return %c0_i32, %arg0 : i32, i32
  }
  func.func @transform_1(%arg0: i32) -> (i32, i32) {
    %c0_i32 = arith.constant 0 : i32
    %c0_i32_0 = arith.constant 0 : i32
    return %c0_i32, %arg0 : i32, i32
  }
  func.func @transform_2(%arg0: i32) -> (i32, i32) {
    %c0_i32 = arith.constant 0 : i32
    %c0_i32_0 = arith.constant 0 : i32
    return %c0_i32, %arg0 : i32, i32
  }
}

</mosaic_0001>

<llo_original>
// kernel: tpu_custom_call.1
$region0: #{tpu_custom_call.1}
  #allocation0 [shape = 'u32[]', space=smem, size = 0x4, offset = 0x4, fixed_abs, tag = 'smem constant byte address 0x4 - core index']
  #allocation1 [shape = 'u32[144,128]{1,0:T(1,128)}', space=vmem, size = 0x12000, scoped, tag = 'internal scratch']
  %s0 = inlined_call_operand.hbm [shape: f32[3,128], index: 0, kind: input, shape index: {}]
  %s1 = inlined_call_operand.hbm [shape: f32[3,128], index: 1, kind: input, shape index: {}]
  %s2 = inlined_call_operand.hbm [shape: f32[2,128], index: 2, kind: output, shape index: {}]
  %s3 = sld [smem:[#allocation0]]
  $region26: #{tpu_custom_call.1} parent=0
    _
  %s5 = ssub.s32 1, %s3
  %s6 = scalar_select 0, %s5, %s3
  $region1: #{tpu_custom_call.1} parent=0
    #allocation2 [shape = 'u8[2048]{0}', space=vmem, size = 0x800, scoped, tag = 'input window, operand 0, single buffered']
    #allocation3 [shape = 's32[1]{0}', space=sflag, size = 0x4, scoped, tag = 'scoped memory for tpu_custom_call.1']
    #allocation4 [shape = 's32[1]{0}', space=sflag, size = 0x4, scoped, tag = 'scoped memory for tpu_custom_call.1']
    #allocation5 [shape = 'u8[2048]{0}', space=vmem, size = 0x800, scoped, tag = 'input window, operand 1, single buffered']
    #allocation6 [shape = 's32[1]{0}', space=sflag, size = 0x4, scoped, tag = 'scoped memory for tpu_custom_call.1']
    #allocation7 [shape = 'u8[1024]{0}', space=vmem, size = 0x400, scoped, tag = 'output window, operand 0, single buffered']
    %7 = vsyncpa [#allocation3], 0
    %8 = vsyncpa [#allocation6], 0
    %9 = vsyncpa [#allocation4], 0
    // Predicated region
    $region2: #{tpu_custom_call.1} parent=1 // pred_check
      _
    $region3: #{tpu_custom_call.1} parent=1 // pred_check_branch
      %11 = sbr.rel (0) target = $region5
    $region4: #{tpu_custom_call.1} parent=1 // pred_region
      %s13 = ssub.s32 64, 64
      %14 = vsyncadd [#allocation3], %s13
      %s16 = sshll.u32 [#allocation2], 4
      %s17 = int_to_ptr.vmem [resolvable:$true] %s16
      %19 = dma.hbm_to_vmem [thread:$0]  %s0, 64, %s17, [#allocation3]
    $region5: #{tpu_custom_call.1} parent=1 // pred_fallthru
      _
    // Predicated region
    $region6: #{tpu_custom_call.1} parent=1 // pred_check
      _
    $region7: #{tpu_custom_call.1} parent=1 // pred_check_branch
      %21 = sbr.rel (0) target = $region9
    $region8: #{tpu_custom_call.1} parent=1 // pred_region
      %s23 = ssub.s32 64, 64
      %24 = vsyncadd [#allocation6], %s23
      %s26 = sshll.u32 [#allocation5], 4
      %s27 = int_to_ptr.vmem [resolvable:$true] %s26
      %29 = dma.hbm_to_vmem [thread:$0]  %s1, 64, %s27, [#allocation6]
    $region9: #{tpu_custom_call.1} parent=1 // pred_fallthru
      _
    // Predicated region
    $region10: #{tpu_custom_call.1} parent=1 // pred_check
      _
    $region11: #{tpu_custom_call.1} parent=1 // pred_check_branch
      %31 = sbr.rel (0) target = $region13
    $region12: #{tpu_custom_call.1} parent=1 // pred_region
      %32 = dma.done [#allocation3], 64
    $region13: #{tpu_custom_call.1} parent=1 // pred_fallthru
      _
    // Predicated region
    $region14: #{tpu_custom_call.1} parent=1 // pred_check
      _
    $region15: #{tpu_custom_call.1} parent=1 // pred_check_branch
      %34 = sbr.rel (0) target = $region17
    $region16: #{tpu_custom_call.1} parent=1 // pred_region
      %35 = dma.done [#allocation6], 64
    $region17: #{tpu_custom_call.1} parent=1 // pred_fallthru
      _
    %v36 = vld [vmem:[#allocation2] sm:$0x7]
    %v37 = vld [vmem:[#allocation5] sm:$0x7]
    %v38 = vsub.f32 0.0, %v36
    %v39 = vsub.f32 1.0, %v36
    %v40 = vsub.f32 5.0, %v36
    %v41 = vmul.f32 %v37, %v37
    %v43 = vrot.slane %v41, 1
    %v45 = vadd.f32 %v41, %v43
    %v46 = vrot.slane %v41, 2
    %v48 = vadd.f32 %v45, %v46
    %v49 = vmax.f32 %v48, 1e-12
    %v50 = vrsqrt.pop %v49
    %v51 = vmul.f32 %v38, %v38
    %v52 = vmul.f32 %v39, %v39
    %v54 = vrot.slane %v52, 1
    %v56 = vadd.f32 %v51, %v54
    %v58 = vrot.slane %v51, 2
    %v60 = vadd.f32 %v56, %v58
    %v61 = vmax.f32 %v60, 1e-12
    %v62 = vrsqrt.pop %v61
    %v63 = vrot.slane %v51, 1
    %v65 = vadd.f32 %v51, %v63
    %v66 = vmul.f32 %v40, %v40
    %v68 = vrot.slane %v66, 2
    %v70 = vadd.f32 %v65, %v68
    %v71 = vmax.f32 %v70, 1e-12
    %v72 = vrsqrt.pop %v71
    %v73 = vmul.f32 %v37, %v38
    %v74 = vmul.f32 %v37, %v39
    %v76 = vrot.slane %v74, 1
    %v78 = vadd.f32 %v73, %v76
    %v80 = vrot.slane %v73, 2
    %v82 = vadd.f32 %v78, %v80
    %v83 = vrot.slane %v73, 1
    %v85 = vadd.f32 %v73, %v83
    %v86 = vmul.f32 %v40, %v37
    %v88 = vrot.slane %v86, 2
    %v90 = vadd.f32 %v85, %v88
    %v91 = vmul.f32 %v38, %v39
    %v93 = vrot.slane %v91, 1
    %v95 = vadd.f32 %v51, %v93
    %v96 = vmul.f32 %v40, %v38
    %v98 = vrot.slane %v96, 2
    %v100 = vadd.f32 %v95, %v98
    %v101 = vmul.f32 %v50, %v62
    %v102 = vmul.f32 %v82, %v101
    %v103 = vmax.f32 %v102, 0.0
    %v104 = vmul.f32 %v102, 2.0
    %v105 = vmul.f32 %v104, %v90
    %v106 = vmul.f32 %v72, %v50
    %v107 = vmul.f32 %v105, %v106
    %v108 = vmul.f32 %v72, %v62
    %v109 = vmul.f32 %v100, %v108
    %v110 = vsub.f32 %v107, %v109
    %vm111 = vcmp.gt.f32.partialorder %v102, 0.0
    %v112 = vmax.f32 %v110, 0.0
    %v113 = vsel %vm111, %v112, 0.0
    %v114 = vmul.f32 %v113, %v113
    %v115 = vmul.f32 %v114, %v114
    %v116 = vmul.f32 %v115, %v115
    %v117 = vmul.f32 %v116, %v116
    %v118 = vmul.f32 %v117, %v117
    %v119 = vmul.f32 %v118, %v118
    %v121 = vrot.slane %v119, 7
    %vm123 = vcmask 1040384
    %v124 = vsel %vm123, %v103, %v121
    %125 = vst [vmem:[#allocation7] sm:$0x3] %v124
    // Predicated region
    $region18: #{tpu_custom_call.1} parent=1 // pred_check
      _
    $region19: #{tpu_custom_call.1} parent=1 // pred_check_branch
      %127 = sbr.rel (0) target = $region21
    $region20: #{tpu_custom_call.1} parent=1 // pred_region
      %s129 = ssub.s32 32, 32
      %130 = vsyncadd [#allocation4], %s129
      %s132 = sshll.u32 [#allocation7], 4
      %s133 = int_to_ptr.vmem [resolvable:$true] %s132
      %135 = dma.vmem_to_hbm [thread:$0]  %s133, 32, %s2, [#allocation4]
    $region21: #{tpu_custom_call.1} parent=1 // pred_fallthru
      _
    // Predicated region
    $region22: #{tpu_custom_call.1} parent=1 // pred_check
      _
    $region23: #{tpu_custom_call.1} parent=1 // pred_check_branch
      %137 = sbr.rel (0) target = $region25
    $region24: #{tpu_custom_call.1} parent=1 // pred_region
      %138 = dma.done [#allocation4], 32
    $region25: #{tpu_custom_call.1} parent=1 // pred_fallthru
      _
    %139 = vsyncpa [#allocation3], 1
    %140 = vsyncpa [#allocation6], 1
    %141 = vsyncpa [#allocation4], 1

</llo_original>
